<compile_context>
chip_gen: v6e
topology: v6e:2x2x1
jax: 0.10.0
libtpu: 0.0.40
codegen_flags: <defaults>
</compile_context>

<pallas_src>
import functools
import math

import jax
import jax.numpy as jnp
from jax import lax
from jax.experimental import pallas as pl
from jax.experimental.pallas import tpu as pltpu


def _l2_mha_kernel(kq_ref, kf_ref, ksq_ref, wf_ref, b_ref, o_ref, *,
                   num_heads, approx_recip):
    """One (batch, q-tile) grid step; all heads handled in a static loop.

    kq_ref : (1, H, tq, Hd)  query-side rows of K = x @ Wq_scaled (mm dtype)
    kf_ref : (1, H, T,  Hd)  full-sequence K (mm dtype)
    ksq_ref: (1, H, 1,  T)   ||k_s||^2, lane-major, f32
    wf_ref : (D, D)          fused value/output matrix, rows stacked per head
    b_ref  : (1, D)          output bias, f32
    o_ref  : (1, tq, D)      output tile, f32
    """
    pk_parts = []
    for h in range(num_heads):
        q = kq_ref[0, h]                      # (tq, Hd)
        k = kf_ref[0, h]                      # (T,  Hd)
        ksq = ksq_ref[0, h]                   # (1,  T), f32

        # Fold the factor 2 of the cross term into the small (tq, Hd) operand
        # instead of scaling the (tq, T) gram matrix (T/Hd x less VPU work).
        q2 = q * jnp.asarray(2.0, dtype=q.dtype)
        # Gram: contract the shared Hd axis directly on the MXU (no k^T copy).
        gram2 = lax.dot_general(q2, k, (((1,), (1,)), ((), ())),
                                preferred_element_type=jnp.float32)   # (tq, T)

        # logits = -(||q||^2 + ||k||^2 - 2 q.k)/sqrt(Hd); scale is folded into
        # K, and ||q||^2 is constant along the softmax (key) axis, so it cancels
        # — the explicit row-max subtraction keeps this exact.
        logits = gram2 - ksq                                          # (tq, T)
        logits = logits - jnp.max(logits, axis=-1, keepdims=True)
        p = jnp.exp(logits)                                           # f32
        denom = jnp.sum(p, axis=-1, keepdims=True)                    # (tq, 1)

        # Unnormalized attention through K; normalize on the small (tq, Hd).
        pk = jnp.dot(p.astype(k.dtype), k,
                     preferred_element_type=jnp.float32)              # (tq, Hd)
        inv = pl.reciprocal(denom, approx=approx_recip)
        pk_parts.append((pk * inv).astype(k.dtype))

    # One full-width (tq, D) @ (D, D) matmul (K = D contraction) instead of H
    # narrow K = Hd matmuls + per-head output accumulation.
    if num_heads == 1:
        pk_all = pk_parts[0]
    else:
        pk_all = jnp.concatenate(pk_parts, axis=-1)                   # (tq, D)
    out = jnp.dot(pk_all, wf_ref[...], preferred_element_type=jnp.float32)
    o_ref[0] = out + b_ref[...]


def _vmem_budget_bytes():
    """Generation-aware VMEM budget with headroom (≈48 MiB v7x, ≈96 MiB v5e/v6e)."""
    try:
        info = pltpu.get_tpu_info()
        cap = getattr(info, "vmem_capacity_bytes", None)
        if cap:
            return (int(cap) * 3) // 4
    except Exception:
        pass
    return 48 * 1024 * 1024   # conservative (v7x-safe) default


def _pick_q_tile(T, N, vmem_budget):
    """Largest q tile such that a few live (tq, T) f32 tensors fit the budget."""
    if T <= 8:
        return T
    cap = max(8, (vmem_budget // 3) // max(1, 3 * T * 4))
    cap = min(cap, 1024, T)
    if N < 2:
        # Leave >=2 q tiles so both v7x TensorCores get parallel work.
        cap = min(cap, max(8, ((T // 2) // 8) * 8))
    cap = (cap // 8) * 8
    tq = cap
    while tq >= 8:
        if T % tq == 0:
            return tq
        tq -= 8
    # TODO(synk): pad T to a multiple of 8 for awkward sequence lengths instead
    # of falling back to a full-length (tq = T) tile.
    return T


def l2_multihead_attention(x, q_weight, v_weight, out_w, out_b, num_heads,
                           *, use_bf16_matmul=False, q_tile=None):
    """x: (T, N, D) float32. Returns (T, N, D), matching the PyTorch module."""
    T, N, D = x.shape
    H = num_heads
    Hd = D // H
    assert Hd * H == D, "embed_dim must be divisible by num_heads"

    f32 = jnp.float32
    mm_dtype = jnp.bfloat16 if use_bf16_matmul else f32

    # ---- one-time precompute in the wrapper (not per grid step) -------------
    # Scale folded into the projection: Wq_s = Wq * Hd**-0.25 makes the
    # 1/sqrt(Hd) logit scaling implicit in K = x @ Wq_s.
    sqrt_scale = float(Hd) ** -0.25
    x_ntd = jnp.transpose(x, (1, 0, 2)).astype(f32)                     # (N, T, D)
    wq_s = q_weight.astype(f32) * sqrt_scale                            # (D, H, Hd)

    # Hoisted key/query projection (q and k share the same projection).
    k_all = jnp.einsum('ntm,mhd->nhtd', x_ntd, wq_s)                    # (N, H, T, Hd)
    # ||k_s||^2, precomputed lane-major (1, T) per (batch, head) — no in-kernel
    # transpose/reduce.
    ksq = jnp.sum(k_all * k_all, axis=-1)[:, :, None, :]                # (N, H, 1, T)

    # Fused value/output path: contrib_h = P_h K_h (Wq_s_h^T Wv_h Wo_h);
    # stack heads along rows -> single (D, D) matrix for one wide matmul.
    wo_r = jnp.transpose(out_w.astype(f32), (1, 0)).reshape(H, Hd, D)   # (H, Hd, D)
    w_fused = jnp.einsum('mhd,mhe,hef->hdf', wq_s, v_weight.astype(f32), wo_r)
    w_full = w_fused.reshape(D, D)                                      # rows = h*Hd + d
    bias = out_b.reshape(1, D).astype(f32)

    # bf16 casting happens here (once), not inside the kernel per grid step.
    k_mm = k_all.astype(mm_dtype)
    w_mm = w_full.astype(mm_dtype)

    vmem_budget = _vmem_budget_bytes()
    tq = q_tile if q_tile is not None else _pick_q_tile(T, N, vmem_budget)
    if T % tq != 0:
        tq = T
    n_q = T // tq

    # TODO(synk): for very long sequences on v7x (full-T K block + (tq,T) logits
    # exceeding ~48 MiB), add a key-axis tile with flash-style online softmax.

    kernel = functools.partial(_l2_mha_kernel, num_heads=H,
                               approx_recip=use_bf16_matmul)

    out_ntd = pl.pallas_call(
        kernel,
        out_shape=jax.ShapeDtypeStruct((N, T, D), f32),
        grid_spec=pltpu.PrefetchScalarGridSpec(
            num_scalar_prefetch=0,
            grid=(N, n_q),
            in_specs=[
                # query-side rows of K (tiled along T)
                pl.BlockSpec((1, H, tq, Hd), lambda b, qi: (b, 0, qi, 0)),
                # full-sequence K: qi-constant -> DMA'd once per batch element
                pl.BlockSpec((1, H, T, Hd), lambda b, qi: (b, 0, 0, 0)),
                # ||k||^2 rows, lane-major, qi-constant
                pl.BlockSpec((1, H, 1, T), lambda b, qi: (b, 0, 0, 0)),
                # fused (D, D) value/output matrix: constant -> VMEM-resident
                pl.BlockSpec((D, D), lambda b, qi: (0, 0)),
                pl.BlockSpec((1, D), lambda b, qi: (0, 0)),
            ],
            out_specs=pl.BlockSpec((1, tq, D), lambda b, qi: (b, qi, 0)),
        ),
        compiler_params=pltpu.CompilerParams(
            dimension_semantics=("parallel", "parallel"),
            vmem_limit_bytes=int(vmem_budget)),
    )(k_mm, k_mm, ksq, w_mm, bias)

    return jnp.transpose(out_ntd, (1, 0, 2))                            # (T, N, D)


def _reference(x, q_weight, v_weight, out_w, out_b, num_heads):
    """Pure-JAX transcription of the PyTorch forward (for verification)."""
    T, N, D = x.shape
    Hd = D // num_heads
    q = jnp.einsum('tbm,mhd->tbhd', x, q_weight)
    k = jnp.einsum('tbm,mhd->tbhd', x, q_weight)
    sq = (jnp.einsum('tbhd,tbhd->tbh', q, q)[:, None]
          + jnp.einsum('sbhd,sbhd->sbh', k, k)[None]
          - 2.0 * jnp.einsum('tbhd,sbhd->tsbh', q, k))
    logits = -sq / math.sqrt(Hd)
    w = jax.nn.softmax(logits, axis=1)
    A = jnp.einsum('mhd,nhd->hmn', q_weight, q_weight) / math.sqrt(Hd)
    XA = jnp.einsum('tbm,hmn->tbhn', x, A)
    PXA = jnp.einsum('tsbh,sbhm->tbhm', w, XA)
    PXAV = jnp.einsum('tbhm,mhd->tbhd', PXA, v_weight).reshape(T, N, D)
    return PXAV @ out_w.T + out_b


if __name__ == "__main__":
    # Small shapes consistent with forward(x: (T, N, D))
    T, N, D, H = 8, 2, 32, 4
    Hd = D // H

    key = jax.random.PRNGKey(0)
    kx, kq, kv, kw, kb = jax.random.split(key, 5)

    # Deterministic, non-trivial parameters (the module's __init__ zeros them,
    # which would make the output identically zero).
    x = jax.random.normal(kx, (T, N, D), dtype=jnp.float32)
    q_weight = 0.1 * jax.random.normal(kq, (D, H, Hd), dtype=jnp.float32)
    v_weight = 0.1 * jax.random.normal(kv, (D, H, Hd), dtype=jnp.float32)
    out_w = 0.1 * jax.random.normal(kw, (D, D), dtype=jnp.float32)
    out_b = 0.1 * jax.random.normal(kb, (D,), dtype=jnp.float32)

    ref = _reference(x, q_weight, v_weight, out_w, out_b, H)

    # f32 path (exact reciprocal)
    out = jax.block_until_ready(
        l2_multihead_attention(x, q_weight, v_weight, out_w, out_b, H))
    assert out.shape == (T, N, D)
    err = float(jnp.max(jnp.abs(out - ref)))
    assert jnp.allclose(out, ref, atol=1e-3, rtol=1e-3), f"f32 max abs err = {err}"

    # bf16 MXU operands / f32 accumulation path (v5e/v6e/v7x fast MXU)
    out_bf16 = jax.block_until_ready(
        l2_multihead_attention(x, q_weight, v_weight, out_w, out_b, H,
                               use_bf16_matmul=True))
    err_bf16 = float(jnp.max(jnp.abs(out_bf16 - ref)))
    assert jnp.allclose(out_bf16, ref, atol=3e-2, rtol=3e-2), (
        f"bf16 max abs err = {err_bf16}")

    print("KERNEL_OK")
</pallas_src>

<mosaic_0001>
module attributes {stable_mosaic.version = 11 : i64} {
  func.func @_l2_mha_kernel(%arg0: i32, %arg1: i32, %arg2: memref<1x4x8x8xf32, #tpu.memory_space<vmem>>, %arg3: memref<1x4x8x8xf32, #tpu.memory_space<vmem>>, %arg4: memref<1x4x1x8xf32, #tpu.memory_space<vmem>>, %arg5: memref<32x32xf32, #tpu.memory_space<vmem>>, %arg6: memref<1x32xf32, #tpu.memory_space<vmem>>, %arg7: memref<1x8x32xf32, #tpu.memory_space<vmem>>) attributes {dimension_semantics = [#tpu.dimension_semantics<parallel>, #tpu.dimension_semantics<parallel>], iteration_bounds = array<i64: 2, 1>, scalar_prefetch = 0 : i64, scratch_operands = 0 : i64, tpu.core_type = #tpu.core_type<tc>, window_params = [{transform_indices = @transform_0, window_bounds = array<i64: 1, 4, 8, 8>}, {transform_indices = @transform_1, window_bounds = array<i64: 1, 4, 8, 8>}, {transform_indices = @transform_2, window_bounds = array<i64: 1, 4, 1, 8>}, {pipeline_mode = #tpu.pipeline_mode<synchronous>, transform_indices = @transform_3, window_bounds = array<i64: 32, 32>}, {pipeline_mode = #tpu.pipeline_mode<synchronous>, transform_indices = @transform_4, window_bounds = array<i64: 1, 32>}, {transform_indices = @transform_5, window_bounds = array<i64: 1, 8, 32>}]} {
    %c0 = arith.constant 0 : index
    %c0_0 = arith.constant 0 : index
    %c0_1 = arith.constant 0 : index
    %c0_2 = arith.constant 0 : index
    %0 = vector.load %arg2[%c0, %c0_0, %c0_1, %c0_2] : memref<1x4x8x8xf32, #tpu.memory_space<vmem>>, vector<1x1x8x8xf32>
    %1 = vector.shape_cast %0 : vector<1x1x8x8xf32> to vector<8x8xf32>
    %c0_3 = arith.constant 0 : index
    %c0_4 = arith.constant 0 : index
    %c0_5 = arith.constant 0 : index
    %c0_6 = arith.constant 0 : index
    %2 = vector.load %arg3[%c0_3, %c0_4, %c0_5, %c0_6] : memref<1x4x8x8xf32, #tpu.memory_space<vmem>>, vector<1x1x8x8xf32>
    %3 = vector.shape_cast %2 : vector<1x1x8x8xf32> to vector<8x8xf32>
    %c0_7 = arith.constant 0 : index
    %c0_8 = arith.constant 0 : index
    %c0_9 = arith.constant 0 : index
    %c0_10 = arith.constant 0 : index
    %4 = vector.load %arg4[%c0_7, %c0_8, %c0_9, %c0_10] : memref<1x4x1x8xf32, #tpu.memory_space<vmem>>, vector<1x1x1x8xf32>
    %5 = vector.shape_cast %4 : vector<1x1x1x8xf32> to vector<1x8xf32>
    %cst = arith.constant 2.000000e+00 : f32
    %6 = vector.broadcast %cst : f32 to vector<8x8xf32>
    %7 = arith.mulf %1, %6 : vector<8x8xf32>
    %cst_11 = arith.constant dense<0.000000e+00> : vector<8x8xf32>
    %8 = tpu.matmul %7, %3, %cst_11 {dimension_numbers = #tpu.dot_dimension_numbers<[1], [1], [0], [0], [0, 0, 1, 0], [], []>} : vector<8x8xf32>, vector<8x8xf32>, vector<8x8xf32> -> vector<8x8xf32>
    %9 = vector.broadcast %5 : vector<1x8xf32> to vector<8x8xf32>
    %10 = arith.subf %8, %9 : vector<8x8xf32>
    %cst_12 = arith.constant dense<0xFF800000> : vector<8xf32>
    %11 = vector.multi_reduction <maximumf>, %10, %cst_12 [1] : vector<8x8xf32> to vector<8xf32>
    %12 = vector.shape_cast %11 : vector<8xf32> to vector<8x1xf32>
    %13 = vector.broadcast %12 : vector<8x1xf32> to vector<8x8xf32>
    %14 = arith.subf %10, %13 : vector<8x8xf32>
    %15 = math.exp %14 : vector<8x8xf32>
    %cst_13 = arith.constant dense<0.000000e+00> : vector<8xf32>
    %16 = vector.multi_reduction <add>, %15, %cst_13 [1] : vector<8x8xf32> to vector<8xf32>
    %17 = vector.shape_cast %16 : vector<8xf32> to vector<8x1xf32>
    %cst_14 = arith.constant dense<0.000000e+00> : vector<8x8xf32>
    %18 = tpu.matmul %15, %3, %cst_14 {dimension_numbers = #tpu.dot_dimension_numbers<[1], [0], [0], [1], [0, 0, 1, 1], [], []>} : vector<8x8xf32>, vector<8x8xf32>, vector<8x8xf32> -> vector<8x8xf32>
    %19 = tpu.reciprocal %17 : vector<8x1xf32> -> vector<8x1xf32>
    %20 = vector.broadcast %19 : vector<8x1xf32> to vector<8x8xf32>
    %21 = arith.mulf %18, %20 : vector<8x8xf32>
    %c0_15 = arith.constant 0 : index
    %c1 = arith.constant 1 : index
    %c0_16 = arith.constant 0 : index
    %c0_17 = arith.constant 0 : index
    %22 = vector.load %arg2[%c0_15, %c1, %c0_16, %c0_17] : memref<1x4x8x8xf32, #tpu.memory_space<vmem>>, vector<1x1x8x8xf32>
    %23 = vector.shape_cast %22 : vector<1x1x8x8xf32> to vector<8x8xf32>
    %c0_18 = arith.constant 0 : index
    %c1_19 = arith.constant 1 : index
    %c0_20 = arith.constant 0 : index
    %c0_21 = arith.constant 0 : index
    %24 = vector.load %arg3[%c0_18, %c1_19, %c0_20, %c0_21] : memref<1x4x8x8xf32, #tpu.memory_space<vmem>>, vector<1x1x8x8xf32>
    %25 = vector.shape_cast %24 : vector<1x1x8x8xf32> to vector<8x8xf32>
    %c0_22 = arith.constant 0 : index
    %c1_23 = arith.constant 1 : index
    %c0_24 = arith.constant 0 : index
    %c0_25 = arith.constant 0 : index
    %26 = vector.load %arg4[%c0_22, %c1_23, %c0_24, %c0_25] : memref<1x4x1x8xf32, #tpu.memory_space<vmem>>, vector<1x1x1x8xf32>
    %27 = vector.shape_cast %26 : vector<1x1x1x8xf32> to vector<1x8xf32>
    %cst_26 = arith.constant 2.000000e+00 : f32
    %28 = vector.broadcast %cst_26 : f32 to vector<8x8xf32>
    %29 = arith.mulf %23, %28 : vector<8x8xf32>
    %cst_27 = arith.constant dense<0.000000e+00> : vector<8x8xf32>
    %30 = tpu.matmul %29, %25, %cst_27 {dimension_numbers = #tpu.dot_dimension_numbers<[1], [1], [0], [0], [0, 0, 1, 0], [], []>} : vector<8x8xf32>, vector<8x8xf32>, vector<8x8xf32> -> vector<8x8xf32>
    %31 = vector.broadcast %27 : vector<1x8xf32> to vector<8x8xf32>
    %32 = arith.subf %30, %31 : vector<8x8xf32>
    %cst_28 = arith.constant dense<0xFF800000> : vector<8xf32>
    %33 = vector.multi_reduction <maximumf>, %32, %cst_28 [1] : vector<8x8xf32> to vector<8xf32>
    %34 = vector.shape_cast %33 : vector<8xf32> to vector<8x1xf32>
    %35 = vector.broadcast %34 : vector<8x1xf32> to vector<8x8xf32>
    %36 = arith.subf %32, %35 : vector<8x8xf32>
    %37 = math.exp %36 : vector<8x8xf32>
    %cst_29 = arith.constant dense<0.000000e+00> : vector<8xf32>
    %38 = vector.multi_reduction <add>, %37, %cst_29 [1] : vector<8x8xf32> to vector<8xf32>
    %39 = vector.shape_cast %38 : vector<8xf32> to vector<8x1xf32>
    %cst_30 = arith.constant dense<0.000000e+00> : vector<8x8xf32>
    %40 = tpu.matmul %37, %25, %cst_30 {dimension_numbers = #tpu.dot_dimension_numbers<[1], [0], [0], [1], [0, 0, 1, 1], [], []>} : vector<8x8xf32>, vector<8x8xf32>, vector<8x8xf32> -> vector<8x8xf32>
    %41 = tpu.reciprocal %39 : vector<8x1xf32> -> vector<8x1xf32>
    %42 = vector.broadcast %41 : vector<8x1xf32> to vector<8x8xf32>
    %43 = arith.mulf %40, %42 : vector<8x8xf32>
    %c0_31 = arith.constant 0 : index
    %c2 = arith.constant 2 : index
    %c0_32 = arith.constant 0 : index
    %c0_33 = arith.constant 0 : index
    %44 = vector.load %arg2[%c0_31, %c2, %c0_32, %c0_33] : memref<1x4x8x8xf32, #tpu.memory_space<vmem>>, vector<1x1x8x8xf32>
    %45 = vector.shape_cast %44 : vector<1x1x8x8xf32> to vector<8x8xf32>
    %c0_34 = arith.constant 0 : index
    %c2_35 = arith.constant 2 : index
    %c0_36 = arith.constant 0 : index
    %c0_37 = arith.constant 0 : index
    %46 = vector.load %arg3[%c0_34, %c2_35, %c0_36, %c0_37] : memref<1x4x8x8xf32, #tpu.memory_space<vmem>>, vector<1x1x8x8xf32>
    %47 = vector.shape_cast %46 : vector<1x1x8x8xf32> to vector<8x8xf32>
    %c0_38 = arith.constant 0 : index
    %c2_39 = arith.constant 2 : index
    %c0_40 = arith.constant 0 : index
    %c0_41 = arith.constant 0 : index
    %48 = vector.load %arg4[%c0_38, %c2_39, %c0_40, %c0_41] : memref<1x4x1x8xf32, #tpu.memory_space<vmem>>, vector<1x1x1x8xf32>
    %49 = vector.shape_cast %48 : vector<1x1x1x8xf32> to vector<1x8xf32>
    %cst_42 = arith.constant 2.000000e+00 : f32
    %50 = vector.broadcast %cst_42 : f32 to vector<8x8xf32>
    %51 = arith.mulf %45, %50 : vector<8x8xf32>
    %cst_43 = arith.constant dense<0.000000e+00> : vector<8x8xf32>
    %52 = tpu.matmul %51, %47, %cst_43 {dimension_numbers = #tpu.dot_dimension_numbers<[1], [1], [0], [0], [0, 0, 1, 0], [], []>} : vector<8x8xf32>, vector<8x8xf32>, vector<8x8xf32> -> vector<8x8xf32>
    %53 = vector.broadcast %49 : vector<1x8xf32> to vector<8x8xf32>
    %54 = arith.subf %52, %53 : vector<8x8xf32>
    %cst_44 = arith.constant dense<0xFF800000> : vector<8xf32>
    %55 = vector.multi_reduction <maximumf>, %54, %cst_44 [1] : vector<8x8xf32> to vector<8xf32>
    %56 = vector.shape_cast %55 : vector<8xf32> to vector<8x1xf32>
    %57 = vector.broadcast %56 : vector<8x1xf32> to vector<8x8xf32>
    %58 = arith.subf %54, %57 : vector<8x8xf32>
    %59 = math.exp %58 : vector<8x8xf32>
    %cst_45 = arith.constant dense<0.000000e+00> : vector<8xf32>
    %60 = vector.multi_reduction <add>, %59, %cst_45 [1] : vector<8x8xf32> to vector<8xf32>
    %61 = vector.shape_cast %60 : vector<8xf32> to vector<8x1xf32>
    %cst_46 = arith.constant dense<0.000000e+00> : vector<8x8xf32>
    %62 = tpu.matmul %59, %47, %cst_46 {dimension_numbers = #tpu.dot_dimension_numbers<[1], [0], [0], [1], [0, 0, 1, 1], [], []>} : vector<8x8xf32>, vector<8x8xf32>, vector<8x8xf32> -> vector<8x8xf32>
    %63 = tpu.reciprocal %61 : vector<8x1xf32> -> vector<8x1xf32>
    %64 = vector.broadcast %63 : vector<8x1xf32> to vector<8x8xf32>
    %65 = arith.mulf %62, %64 : vector<8x8xf32>
    %c0_47 = arith.constant 0 : index
    %c3 = arith.constant 3 : index
    %c0_48 = arith.constant 0 : index
    %c0_49 = arith.constant 0 : index
    %66 = vector.load %arg2[%c0_47, %c3, %c0_48, %c0_49] : memref<1x4x8x8xf32, #tpu.memory_space<vmem>>, vector<1x1x8x8xf32>
    %67 = vector.shape_cast %66 : vector<1x1x8x8xf32> to vector<8x8xf32>
    %c0_50 = arith.constant 0 : index
    %c3_51 = arith.constant 3 : index
    %c0_52 = arith.constant 0 : index
    %c0_53 = arith.constant 0 : index
    %68 = vector.load %arg3[%c0_50, %c3_51, %c0_52, %c0_53] : memref<1x4x8x8xf32, #tpu.memory_space<vmem>>, vector<1x1x8x8xf32>
    %69 = vector.shape_cast %68 : vector<1x1x8x8xf32> to vector<8x8xf32>
    %c0_54 = arith.constant 0 : index
    %c3_55 = arith.constant 3 : index
    %c0_56 = arith.constant 0 : index
    %c0_57 = arith.constant 0 : index
    %70 = vector.load %arg4[%c0_54, %c3_55, %c0_56, %c0_57] : memref<1x4x1x8xf32, #tpu.memory_space<vmem>>, vector<1x1x1x8xf32>
    %71 = vector.shape_cast %70 : vector<1x1x1x8xf32> to vector<1x8xf32>
    %cst_58 = arith.constant 2.000000e+00 : f32
    %72 = vector.broadcast %cst_58 : f32 to vector<8x8xf32>
    %73 = arith.mulf %67, %72 : vector<8x8xf32>
    %cst_59 = arith.constant dense<0.000000e+00> : vector<8x8xf32>
    %74 = tpu.matmul %73, %69, %cst_59 {dimension_numbers = #tpu.dot_dimension_numbers<[1], [1], [0], [0], [0, 0, 1, 0], [], []>} : vector<8x8xf32>, vector<8x8xf32>, vector<8x8xf32> -> vector<8x8xf32>
    %75 = vector.broadcast %71 : vector<1x8xf32> to vector<8x8xf32>
    %76 = arith.subf %74, %75 : vector<8x8xf32>
    %cst_60 = arith.constant dense<0xFF800000> : vector<8xf32>
    %77 = vector.multi_reduction <maximumf>, %76, %cst_60 [1] : vector<8x8xf32> to vector<8xf32>
    %78 = vector.shape_cast %77 : vector<8xf32> to vector<8x1xf32>
    %79 = vector.broadcast %78 : vector<8x1xf32> to vector<8x8xf32>
    %80 = arith.subf %76, %79 : vector<8x8xf32>
    %81 = math.exp %80 : vector<8x8xf32>
    %cst_61 = arith.constant dense<0.000000e+00> : vector<8xf32>
    %82 = vector.multi_reduction <add>, %81, %cst_61 [1] : vector<8x8xf32> to vector<8xf32>
    %83 = vector.shape_cast %82 : vector<8xf32> to vector<8x1xf32>
    %cst_62 = arith.constant dense<0.000000e+00> : vector<8x8xf32>
    %84 = tpu.matmul %81, %69, %cst_62 {dimension_numbers = #tpu.dot_dimension_numbers<[1], [0], [0], [1], [0, 0, 1, 1], [], []>} : vector<8x8xf32>, vector<8x8xf32>, vector<8x8xf32> -> vector<8x8xf32>
    %85 = tpu.reciprocal %83 : vector<8x1xf32> -> vector<8x1xf32>
    %86 = vector.broadcast %85 : vector<8x1xf32> to vector<8x8xf32>
    %87 = arith.mulf %84, %86 : vector<8x8xf32>
    %88 = tpu.concatenate %21, %43, %65, %87 in 1 : vector<8x8xf32>, vector<8x8xf32>, vector<8x8xf32>, vector<8x8xf32> -> vector<8x32xf32>
    %c0_63 = arith.constant 0 : index
    %c0_64 = arith.constant 0 : index
    %89 = vector.load %arg5[%c0_63, %c0_64] : memref<32x32xf32, #tpu.memory_space<vmem>>, vector<32x32xf32>
    %cst_65 = arith.constant dense<0.000000e+00> : vector<8x32xf32>
    %90 = tpu.matmul %88, %89, %cst_65 {dimension_numbers = #tpu.dot_dimension_numbers<[1], [0], [0], [1], [0, 0, 1, 1], [], []>} : vector<8x32xf32>, vector<32x32xf32>, vector<8x32xf32> -> vector<8x32xf32>
    %c0_66 = arith.constant 0 : index
    %c0_67 = arith.constant 0 : index
    %91 = vector.load %arg6[%c0_66, %c0_67] : memref<1x32xf32, #tpu.memory_space<vmem>>, vector<1x32xf32>
    %92 = vector.broadcast %91 : vector<1x32xf32> to vector<8x32xf32>
    %93 = arith.addf %90, %92 : vector<8x32xf32>
    %c0_68 = arith.constant 0 : index
    %c0_69 = arith.constant 0 : index
    %c0_70 = arith.constant 0 : index
    %94 = vector.load %arg7[%c0_68, %c0_69, %c0_70] : memref<1x8x32xf32, #tpu.memory_space<vmem>>, vector<1x8x32xf32>
    %95 = vector.shape_cast %94 : vector<1x8x32xf32> to vector<8x32xf32>
    %96 = vector.shape_cast %93 : vector<8x32xf32> to vector<1x8x32xf32>
    tpu.vector_store %arg7[%c0_68, %c0_69, %c0_70], %96 {strides = array<i32>} : memref<1x8x32xf32, #tpu.memory_space<vmem>>, vector<1x8x32xf32>,
    return
  }
  func.func @transform_0(%arg0: i32, %arg1: i32) -> (i32, i32, i32, i32) {
    %c0_i32 = arith.constant 0 : i32
    %c0_i32_0 = arith.constant 0 : i32
    %c0_i32_1 = arith.constant 0 : i32
    return %arg0, %c0_i32, %arg1, %c0_i32_0 : i32, i32, i32, i32
  }
  func.func @transform_1(%arg0: i32, %arg1: i32) -> (i32, i32, i32, i32) {
    %c0_i32 = arith.constant 0 : i32
    %c0_i32_0 = arith.constant 0 : i32
    %c0_i32_1 = arith.constant 0 : i32
    %c0_i32_2 = arith.constant 0 : i32
    return %arg0, %c0_i32, %c0_i32_0, %c0_i32_1 : i32, i32, i32, i32
  }
  func.func @transform_2(%arg0: i32, %arg1: i32) -> (i32, i32, i32, i32) {
    %c0_i32 = arith.constant 0 : i32
    %c0_i32_0 = arith.constant 0 : i32
    %c0_i32_1 = arith.constant 0 : i32
    %c0_i32_2 = arith.constant 0 : i32
    return %arg0, %c0_i32, %c0_i32_0, %c0_i32_1 : i32, i32, i32, i32
  }
  func.func @transform_3(%arg0: i32, %arg1: i32) -> (i32, i32) {
    %c0_i32 = arith.constant 0 : i32
    %c0_i32_0 = arith.constant 0 : i32
    %c0_i32_1 = arith.constant 0 : i32
    return %c0_i32, %c0_i32_0 : i32, i32
  }
  func.func @transform_4(%arg0: i32, %arg1: i32) -> (i32, i32) {
    %c0_i32 = arith.constant 0 : i32
    %c0_i32_0 = arith.constant 0 : i32
    %c0_i32_1 = arith.constant 0 : i32
    return %c0_i32, %c0_i32_0 : i32, i32
  }
  func.func @transform_5(%arg0: i32, %arg1: i32) -> (i32, i32, i32) {
    %c0_i32 = arith.constant 0 : i32
    %c0_i32_0 = arith.constant 0 : i32
    return %arg0, %arg1, %c0_i32 : i32, i32, i32
  }
}

</mosaic_0001>

<llo_original>
// kernel: tpu_custom_call.1
$region0: #{tpu_custom_call.1}
  #allocation0 [shape = 'u32[]', space=smem, size = 0x4, offset = 0x4, fixed_abs, tag = 'smem constant byte address 0x4 - core index']
  #allocation1 [shape = 'u32[144,128]{1,0:T(1,128)}', space=vmem, size = 0x12000, scoped, tag = 'internal scratch']
  %s0 = inlined_call_operand.hbm [shape: f32[2,4,8,8], index: 0, kind: input, shape index: {}]
  %s1 = inlined_call_operand.hbm [shape: f32[2,4,8,8], index: 1, kind: input, shape index: {}]
  %s2 = inlined_call_operand.hbm [shape: f32[2,4,1,8], index: 2, kind: input, shape index: {}]
  %s3 = inlined_call_operand.hbm [shape: f32[32,32], index: 3, kind: input, shape index: {}]
  %s4 = inlined_call_operand.vmem [shape: f32[1,32], index: 4, kind: input, shape index: {}]
  %s5 = inlined_call_operand.hbm [shape: f32[2,8,32], index: 5, kind: output, shape index: {}]
  %s6 = sld [smem:[#allocation0]]
  $region69: #{tpu_custom_call.1} parent=0
    _
  %s8 = ssub.s32 1, %s6
  %s9 = scalar_select 0, %s8, %s6
  $region1: #{tpu_custom_call.1} parent=0
    #allocation2 [shape = 'u8[32768]{0}', space=vmem, size = 0x8000, scoped, tag = 'input window, operand 0']
    #allocation3 [shape = 's32[2]{0}', space=sflag, size = 0x8, scoped, tag = 'scoped memory for tpu_custom_call.1']
    #allocation4 [shape = 's32[2]{0}', space=sflag, size = 0x8, scoped, tag = 'scoped memory for tpu_custom_call.1']
    #allocation5 [shape = 'u8[32768]{0}', space=vmem, size = 0x8000, scoped, tag = 'input window, operand 1']
    #allocation6 [shape = 's32[2]{0}', space=sflag, size = 0x8, scoped, tag = 'scoped memory for tpu_custom_call.1']
    #allocation7 [shape = 'u8[4096]{0}', space=vmem, size = 0x1000, scoped, tag = 'input window, operand 2']
    #allocation8 [shape = 'u8[16384]{0}', space=vmem, size = 0x4000, scoped, tag = 'input window, operand 3, single buffered']
    #allocation9 [shape = 's32[1]{0}', space=sflag, size = 0x4, scoped, tag = 'scoped memory for tpu_custom_call.1']
    #allocation10 [shape = 'u8[8192]{0}', space=vmem, size = 0x2000, scoped, tag = 'output window, operand 0']
    %10 = vsyncpa [#allocation3], 0
    %s11 = scalar_lea.sflag [#allocation3], 1
    %12 = vsyncpa %s11, 0
    %13 = vsyncpa [#allocation6], 0
    %s14 = scalar_lea.sflag [#allocation6], 1
    %15 = vsyncpa %s14, 0
    %16 = vsyncpa [#allocation9], 0
    %17 = vsyncpa [#allocation4], 0
    %s18 = scalar_lea.sflag [#allocation4], 1
    %19 = vsyncpa %s18, 0
    loop: start=0, step=1, limit=4
    $region2: #{tpu_custom_call.1} parent=1 // loop_pre_header
      _
    $region3: #{tpu_custom_call.1} parent=1 // loop_header
      %s21 = sphi 0, %s25
      %p22 = scmp.ge.s32.totalorder %s21, 4
      %s28 = sphi 0, %s40
      %s29 = sphi 0, %s36
      %s30 = sphi 0, %s28
      %s31 = sphi 0, %s29
      %s32 = sphi 0, %s30
      %s33 = sphi 0, %s31
      %s45 = sphi 0, %s47
      %s48 = sphi 0, %s45
      %s49 = sphi 0, %s48
      %s65 = sphi 0, %s49
      %s71 = sphi 0, %s73
      %s74 = sphi 0, %s71
      %s75 = sphi 0, %s74
      %s91 = sphi 0, %s75
      %s97 = sphi 0, %s99
      %s100 = sphi 0, %s97
      %s101 = sphi 0, %s100
      %s117 = sphi 0, %s101
      %s121 = sphi 0, %s121
      %s123 = sphi 0, %s121
      %s124 = sphi 0, %s123
      %s138 = sphi 0, %s124
      %s142 = sphi 0, %s142
      %s144 = sphi 0, %s142
      %s145 = sphi 0, %s144
      %s159 = sphi 0, %s145
      %s167 = sphi 0, %s169
      %s170 = sphi 0, %s167
      %s171 = sphi 0, %s170
      %s187 = sphi 0, %s171
    $region4: #{tpu_custom_call.1} parent=1 // loop_header_branch
      %24 = sbr.rel (%p22) target = $region8
    $region5: #{tpu_custom_call.1} parent=1 // loop_body
      %s26 = ssub.s32 %s21, 1
      %s27 = ssub.s32 %s21, 2
      %s34 = sadd.s32 1, %s29
      %p35 = scmp.ge.s32.totalorder %s34, 1
      %s36 = scalar_select %p35, 0, %s34
      %s37 = sadd.s32 1, %s28
      %s38 = scalar_select %p35, %s37, %s28
      %p39 = scmp.ge.s32.totalorder %s38, 2
      %s40 = scalar_select %p39, 0, %s38
      %s41 = ssub.s32 %s28, %s40
      %s42 = ssub.s32 %s29, %s36
      %s43 = sor.u32 %s41, %s42
      %p44 = scmp.eq.s32.totalorder %s43, 0
      %s46 = sadd.s32 %s45, 1
      %s47 = scalar_select %p44, %s45, %s46
      %p50 = pneg %p44
      %p51 = scmp.eq.s32.totalorder %s21, 1
      %p52 = por %p50, %p51
      %p53 = scmp.ne.s32.totalorder %s45, %s48
      %p54 = scmp.eq.s32.totalorder %s21, 0
      %p55 = por %p53, %p54
      %p56 = scmp.ne.s32.totalorder %s45, %s48
      %p57 = scmp.eq.s32.totalorder %s26, 1
      %p58 = por %p56, %p57
      %p59 = scmp.ne.s32.totalorder %s48, %s49
      %p60 = scmp.eq.s32.totalorder %s26, 0
      %p61 = por %p59, %p60
      %p62 = scmp.ne.s32.totalorder %s48, %s49
      %p63 = scmp.eq.s32.totalorder %s27, 1
      %p64 = por %p62, %p63
      %p66 = scmp.ne.s32.totalorder %s49, %s65
      %p67 = scmp.eq.s32.totalorder %s27, 0
      %p68 = por %p66, %p67
      %s69 = ssub.s32 %s28, %s40
      %p70 = scmp.eq.s32.totalorder %s69, 0
      %s72 = sadd.s32 %s71, 1
      %s73 = scalar_select %p70, %s71, %s72
      %p76 = pneg %p70
      %p77 = scmp.eq.s32.totalorder %s21, 1
      %p78 = por %p76, %p77
      %p79 = scmp.ne.s32.totalorder %s71, %s74
      %p80 = scmp.eq.s32.totalorder %s21, 0
      %p81 = por %p79, %p80
      %p82 = scmp.ne.s32.totalorder %s71, %s74
      %p83 = scmp.eq.s32.totalorder %s26, 1
      %p84 = por %p82, %p83
      %p85 = scmp.ne.s32.totalorder %s74, %s75
      %p86 = scmp.eq.s32.totalorder %s26, 0
      %p87 = por %p85, %p86
      %p88 = scmp.ne.s32.totalorder %s74, %s75
      %p89 = scmp.eq.s32.totalorder %s27, 1
      %p90 = por %p88, %p89
      %p92 = scmp.ne.s32.totalorder %s75, %s91
      %p93 = scmp.eq.s32.totalorder %s27, 0
      %p94 = por %p92, %p93
      %s95 = ssub.s32 %s28, %s40
      %p96 = scmp.eq.s32.totalorder %s95, 0
      %s98 = sadd.s32 %s97, 1
      %s99 = scalar_select %p96, %s97, %s98
      %p102 = pneg %p96
      %p103 = scmp.eq.s32.totalorder %s21, 1
      %p104 = por %p102, %p103
      %p105 = scmp.ne.s32.totalorder %s97, %s100
      %p106 = scmp.eq.s32.totalorder %s21, 0
      %p107 = por %p105, %p106
      %p108 = scmp.ne.s32.totalorder %s97, %s100
      %p109 = scmp.eq.s32.totalorder %s26, 1
      %p110 = por %p108, %p109
      %p111 = scmp.ne.s32.totalorder %s100, %s101
      %p112 = scmp.eq.s32.totalorder %s26, 0
      %p113 = por %p111, %p112
      %p114 = scmp.ne.s32.totalorder %s100, %s101
      %p115 = scmp.eq.s32.totalorder %s27, 1
      %p116 = por %p114, %p115
      %p118 = scmp.ne.s32.totalorder %s101, %s117
      %p119 = scmp.eq.s32.totalorder %s27, 0
      %p120 = por %p118, %p119
      %s122 = sadd.s32 %s121, 1
      %p125 = scmp.eq.s32.totalorder %s21, 1
      %p126 = scmp.ne.s32.totalorder %s121, %s123
      %p127 = scmp.eq.s32.totalorder %s21, 0
      %p128 = por %p126, %p127
      %p129 = scmp.ne.s32.totalorder %s121, %s123
      %p130 = scmp.eq.s32.totalorder %s26, 1
      %p131 = por %p129, %p130
      %p132 = scmp.ne.s32.totalorder %s123, %s124
      %p133 = scmp.eq.s32.totalorder %s26, 0
      %p134 = por %p132, %p133
      %p135 = scmp.ne.s32.totalorder %s123, %s124
      %p136 = scmp.eq.s32.totalorder %s27, 1
      %p137 = por %p135, %p136
      %p139 = scmp.ne.s32.totalorder %s124, %s138
      %p140 = scmp.eq.s32.totalorder %s27, 0
      %p141 = por %p139, %p140
      %s143 = sadd.s32 %s142, 1
      %p146 = scmp.eq.s32.totalorder %s21, 1
      %p147 = scmp.ne.s32.totalorder %s142, %s144
      %p148 = scmp.eq.s32.totalorder %s21, 0
      %p149 = por %p147, %p148
      %p150 = scmp.ne.s32.totalorder %s142, %s144
      %p151 = scmp.eq.s32.totalorder %s26, 1
      %p152 = por %p150, %p151
      %p153 = scmp.ne.s32.totalorder %s144, %s145
      %p154 = scmp.eq.s32.totalorder %s26, 0
      %p155 = por %p153, %p154
      %p156 = scmp.ne.s32.totalorder %s144, %s145
      %p157 = scmp.eq.s32.totalorder %s27, 1
      %p158 = por %p156, %p157
      %p160 = scmp.ne.s32.totalorder %s145, %s159
      %p161 = scmp.eq.s32.totalorder %s27, 0
      %p162 = por %p160, %p161
      %s163 = ssub.s32 %s28, %s40
      %s164 = ssub.s32 %s29, %s36
      %s165 = sor.u32 %s163, %s164
      %p166 = scmp.eq.s32.totalorder %s165, 0
      %s168 = sadd.s32 %s167, 1
      %s169 = scalar_select %p166, %s167, %s168
      %p172 = pneg %p166
      %p173 = scmp.eq.s32.totalorder %s21, 1
      %p174 = por %p172, %p173
      %p175 = scmp.ne.s32.totalorder %s167, %s170
      %p176 = scmp.eq.s32.totalorder %s21, 0
      %p177 = por %p175, %p176
      %p178 = scmp.ne.s32.totalorder %s167, %s170
      %p179 = scmp.eq.s32.totalorder %s26, 1
      %p180 = por %p178, %p179
      %p181 = scmp.ne.s32.totalorder %s170, %s171
      %p182 = scmp.eq.s32.totalorder %s26, 0
      %p183 = por %p181, %p182
      %p184 = scmp.ne.s32.totalorder %s170, %s171
      %p185 = scmp.eq.s32.totalorder %s27, 1
      %p186 = por %p184, %p185
      %p188 = scmp.ne.s32.totalorder %s171, %s187
      %p189 = scmp.eq.s32.totalorder %s27, 0
      %p190 = por %p188, %p189
      %p191 = scmp.le.s32.totalorder 1, %s21
      %p192 = scmp.lt.s32.totalorder %s21, 3
      %p193 = pnand %p191, %p192
      %p194 = pneg %p193
      // Predicated region
      $region9: #{tpu_custom_call.1} parent=5 // pred_check
        _
      $region10: #{tpu_custom_call.1} parent=5 // pred_check_branch
        %196 = sbr.rel (%p193) target = $region12
      $region11: #{tpu_custom_call.1} parent=5 // pred_region
        %s197 = ssub.s32 %s21, 1
        // Predicated region
        $region13: #{tpu_custom_call.1} parent=11 // pred_check
          %p198 = pneg %p134
        $region14: #{tpu_custom_call.1} parent=11 // pred_check_branch
          %200 = sbr.rel (%p198) target = $region16
        $region15: #{tpu_custom_call.1} parent=11 // pred_region
          %s202 = ssub.s32 512, 512
          %203 = vsyncadd [#allocation9], %s202
          %s204 = sshll.u32 [#allocation8], 4
          %s205 = int_to_ptr.vmem [resolvable:$true] %s204
          %210 = dma.hbm_to_vmem [thread:$0]  %s3, 512, %s205, [#allocation9], 128, 128, 8
        $region16: #{tpu_custom_call.1} parent=11 // pred_fallthru
          _
        // Predicated region
        $region17: #{tpu_custom_call.1} parent=11 // pred_check
          %p211 = pneg %p155
        $region18: #{tpu_custom_call.1} parent=11 // pred_check_branch
          %213 = sbr.rel (%p211) target = $region20
        $region19: #{tpu_custom_call.1} parent=11 // pred_region
          _
        $region20: #{tpu_custom_call.1} parent=11 // pred_fallthru
          _
      $region12: #{tpu_custom_call.1} parent=5 // pred_fallthru
        _
      %p214 = scmp.lt.s32.totalorder %s21, 2
      // Predicated region
      $region21: #{tpu_custom_call.1} parent=5 // pred_check
        %p215 = pneg %p214
      $region22: #{tpu_custom_call.1} parent=5 // pred_check_branch
        %217 = sbr.rel (%p215) target = $region24
      $region23: #{tpu_custom_call.1} parent=5 // pred_region
        // Predicated region
        $region25: #{tpu_custom_call.1} parent=23 // pred_check
          %p218 = pneg %p55
        $region26: #{tpu_custom_call.1} parent=23 // pred_check_branch
          %220 = sbr.rel (%p218) target = $region28
        $region27: #{tpu_custom_call.1} parent=23 // pred_region
          %s221 = sand.u32 %s45, 1
          %s222 = scalar_lea.sflag [#allocation3], %s221
          %s223 = sand.u32 %s45, 1
          %s224 = smul.addr %s223, 32
          %s225 = scalar_lea.vmem [#allocation2], %s224
          %s227 = ssub.s32 512, 512
          %228 = vsyncadd %s222, %s227
          %s229 = smul.addr %s28, 4
          %s230 = sadd.s32 %s29, %s229
          %s231 = smul.addr %s230, 128
          %s232 = scalar_lea.hbm %s0, %s231
          %s233 = sshll.u32 %s225, 4
          %s234 = int_to_ptr.vmem [resolvable:$true] %s233
          %239 = dma.hbm_to_vmem [thread:$0]  %s232, 512, %s234, %s222, 128, 128, 8
        $region28: #{tpu_custom_call.1} parent=23 // pred_fallthru
          _
        // Predicated region
        $region29: #{tpu_custom_call.1} parent=23 // pred_check
          %p240 = pneg %p81
        $region30: #{tpu_custom_call.1} parent=23 // pred_check_branch
          %242 = sbr.rel (%p240) target = $region32
        $region31: #{tpu_custom_call.1} parent=23 // pred_region
          %s243 = sand.u32 %s21, 1
          %s244 = scalar_lea.sflag [#allocation6], %s243
          %s245 = sand.u32 %s71, 1
          %s246 = smul.addr %s245, 32
          %s247 = scalar_lea.vmem [#allocation5], %s246
          %s249 = ssub.s32 512, 512
          %250 = vsyncadd %s244, %s249
          %s251 = smul.addr %s28, 4
          %s252 = smul.addr %s251, 128
          %s253 = scalar_lea.hbm %s1, %s252
          %s254 = sshll.u32 %s247, 4
          %s255 = int_to_ptr.vmem [resolvable:$true] %s254
          %260 = dma.hbm_to_vmem [thread:$0]  %s253, 512, %s255, %s244, 128, 128, 8
        $region32: #{tpu_custom_call.1} parent=23 // pred_fallthru
          _
        // Predicated region
        $region33: #{tpu_custom_call.1} parent=23 // pred_check
          %p261 = pneg %p107
        $region34: #{tpu_custom_call.1} parent=23 // pred_check_branch
          %263 = sbr.rel (%p261) target = $region36
        $region35: #{tpu_custom_call.1} parent=23 // pred_region
          %s264 = sand.u32 %s21, 1
          %s265 = scalar_lea.sflag [#allocation6], %s264
          %s266 = sand.u32 %s97, 1
          %s267 = smul.addr %s266, 4
          %s268 = scalar_lea.vmem [#allocation7], %s267
          %s270 = ssub.s32 64, 64
          %271 = vsyncadd %s265, %s270
          %s272 = smul.addr %s28, 4
          %s273 = smul.addr %s272, 16
          %s274 = scalar_lea.hbm %s2, %s273
          %s275 = sshll.u32 %s268, 4
          %s276 = int_to_ptr.vmem [resolvable:$true] %s275
          %281 = dma.hbm_to_vmem [thread:$0]  %s274, 64, %s276, %s265, 16, 16, 1
        $region36: #{tpu_custom_call.1} parent=23 // pred_fallthru
          _
      $region24: #{tpu_custom_call.1} parent=5 // pred_fallthru
        _
      %p282 = scmp.le.s32.totalorder 1, %s21
      %p283 = scmp.lt.s32.totalorder %s21, 3
      %p284 = pnand %p282, %p283
      %p285 = pneg %p284
      // Predicated region
      $region37: #{tpu_custom_call.1} parent=5 // pred_check
        _
      $region38: #{tpu_custom_call.1} parent=5 // pred_check_branch
        %287 = sbr.rel (%p284) target = $region40
      $region39: #{tpu_custom_call.1} parent=5 // pred_region
        %s288 = ssub.s32 %s21, 1
        %s289 = sand.u32 %s48, 1
        %s290 = scalar_lea.sflag [#allocation3], %s289
        %s291 = sand.u32 %s48, 1
        %s292 = smul.addr %s291, 32
        %s293 = scalar_lea.vmem [#allocation2], %s292
        // Predicated region
        $region41: #{tpu_custom_call.1} parent=39 // pred_check
          %p294 = pneg %p61
        $region42: #{tpu_custom_call.1} parent=39 // pred_check_branch
          %296 = sbr.rel (%p294) target = $region44
        $region43: #{tpu_custom_call.1} parent=39 // pred_region
          %297 = dma.done %s290, 512
        $region44: #{tpu_custom_call.1} parent=39 // pred_fallthru
          _
        %s298 = sand.u32 %s26, 1
        %s299 = scalar_lea.sflag [#allocation6], %s298
        %s300 = sand.u32 %s74, 1
        %s301 = smul.addr %s300, 32
        %s302 = scalar_lea.vmem [#allocation5], %s301
        // Predicated region
        $region45: #{tpu_custom_call.1} parent=39 // pred_check
          %p303 = pneg %p87
        $region46: #{tpu_custom_call.1} parent=39 // pred_check_branch
          %305 = sbr.rel (%p303) target = $region48
        $region47: #{tpu_custom_call.1} parent=39 // pred_region
          %306 = dma.done %s299, 512
        $region48: #{tpu_custom_call.1} parent=39 // pred_fallthru
          _
        %s307 = sand.u32 %s26, 1
        %s308 = scalar_lea.sflag [#allocation6], %s307
        %s309 = sand.u32 %s100, 1
        %s310 = smul.addr %s309, 4
        %s311 = scalar_lea.vmem [#allocation7], %s310
        // Predicated region
        $region49: #{tpu_custom_call.1} parent=39 // pred_check
          %p312 = pneg %p113
        $region50: #{tpu_custom_call.1} parent=39 // pred_check_branch
          %314 = sbr.rel (%p312) target = $region52
        $region51: #{tpu_custom_call.1} parent=39 // pred_region
          %315 = dma.done %s308, 64
        $region52: #{tpu_custom_call.1} parent=39 // pred_fallthru
          _
        // Predicated region
        $region53: #{tpu_custom_call.1} parent=39 // pred_check
          %p316 = pneg %p134
        $region54: #{tpu_custom_call.1} parent=39 // pred_check_branch
          %318 = sbr.rel (%p316) target = $region56
        $region55: #{tpu_custom_call.1} parent=39 // pred_region
          %319 = dma.done [#allocation9], 512
        $region56: #{tpu_custom_call.1} parent=39 // pred_fallthru
          _
        %s320 = sand.u32 %s48, 1
        %s321 = scalar_lea.sflag [#allocation3], %s320
        %s322 = sand.u32 %s48, 1
        %s323 = smul.addr %s322, 32
        %s324 = scalar_lea.vmem [#allocation2], %s323
        %p325 = pneg %p61
        %p326 = pneg %p58
        %s327 = sand.u32 %s26, 1
        %s328 = scalar_lea.sflag [#allocation6], %s327
        %s329 = sand.u32 %s74, 1
        %s330 = smul.addr %s329, 32
        %s331 = scalar_lea.vmem [#allocation5], %s330
        %p332 = pneg %p87
        %p333 = pneg %p84
        %s334 = sand.u32 %s26, 1
        %s335 = scalar_lea.sflag [#allocation6], %s334
        %s336 = sand.u32 %s100, 1
        %s337 = smul.addr %s336, 4
        %s338 = scalar_lea.vmem [#allocation7], %s337
        %p339 = pneg %p113
        %p340 = pneg %p110
        %p341 = pneg %p134
        %p342 = pneg %p131
        %p343 = pneg %p155
        %p344 = pneg %p152
        %p345 = pneg %p183
        %p346 = pneg %p180
        %s347 = sand.u32 %s170, 1
        %s348 = scalar_lea.sflag [#allocation4], %s347
        %s349 = sand.u32 %s170, 1
        %s350 = smul.addr %s349, 8
        %s351 = scalar_lea.vmem [#allocation10], %s350
        %v352 = vld [vmem:[%s293] sm:$0xff]
        %v353 = vld [vmem:[%s302] sm:$0xff]
        %v354 = vld [vmem:[%s311] sm:$0x1]
        %v355 = vmul.f32 %v352, 2.0
        %vm356 = vcmask 64512
        %v358 = vsel %vm356, %v355, 0
        %v361 = vsel %vm356, %v353, 0
        %363 = vmatprep.subr.mxu0 0.0
        %364 = vmatpush1.xpose.msra.mxu0 0.0
        %365 = vmatprep.subr.mxu0 0.0
        %366 = vmatpush1.xpose.msra.mxu0 0.0
        %367 = vmatprep.subr.mxu0 0.0
        %368 = vmatpush1.xpose.msra.mxu0 0.0
        %369 = vmatprep.subr.mxu0 0.0
        %370 = vmatpush1.xpose.msra.mxu0 0.0
        %371 = vmatprep.subr.mxu0 0.0
        %372 = vmatpush1.xpose.msra.mxu0 0.0
        %373 = vmatprep.subr.mxu0 0.0
        %374 = vmatpush1.xpose.msra.mxu0 0.0
        %375 = vmatprep.subr.mxu0 0.0
        %376 = vmatpush1.xpose.msra.mxu0 0.0
        %377 = vmatprep.subr.mxu0 0.0
        %378 = vmatpush1.xpose.msra.mxu0 0.0
        %379 = vmatprep.subr.mxu0 0.0
        %380 = vmatpush1.xpose.msra.mxu0 0.0
        %381 = vmatprep.subr.mxu0 0.0
        %382 = vmatpush1.xpose.msra.mxu0 0.0
        %383 = vmatprep.subr.mxu0 0.0
        %384 = vmatpush1.xpose.msra.mxu0 0.0
        %385 = vmatprep.subr.mxu0 0.0
        %386 = vmatpush1.xpose.msra.mxu0 0.0
        %387 = vmatprep.subr.mxu0 0.0
        %388 = vmatpush1.xpose.msra.mxu0 0.0
        %389 = vmatprep.subr.mxu0 0.0
        %390 = vmatpush1.xpose.msra.mxu0 0.0
        %391 = vmatprep.subr.mxu0 0.0
        %392 = vmatpush1.xpose.msra.mxu0 0.0
        %393 = vmatprep.subr.mxu0 0.0
        %394 = vmatpush1.xpose.msra.mxu0 %v361
        %395 = vmatprep.subr.mxu0 0.0
        %396 = vmatpush2.xpose.msra.mxu0 0.0
        %397 = vmatprep.subr.mxu0 0.0
        %398 = vmatpush2.xpose.msra.mxu0 0.0
        %399 = vmatprep.subr.mxu0 0.0
        %400 = vmatpush2.xpose.msra.mxu0 0.0
        %401 = vmatprep.subr.mxu0 0.0
        %402 = vmatpush2.xpose.msra.mxu0 0.0
        %403 = vmatprep.subr.mxu0 0.0
        %404 = vmatpush2.xpose.msra.mxu0 0.0
        %405 = vmatprep.subr.mxu0 0.0
        %406 = vmatpush2.xpose.msra.mxu0 0.0
        %407 = vmatprep.subr.mxu0 0.0
        %408 = vmatpush2.xpose.msra.mxu0 0.0
        %409 = vmatprep.subr.mxu0 0.0
        %410 = vmatpush2.xpose.msra.mxu0 0.0
        %411 = vmatprep.subr.mxu0 0.0
        %412 = vmatpush2.xpose.msra.mxu0 0.0
        %413 = vmatprep.subr.mxu0 0.0
        %414 = vmatpush2.xpose.msra.mxu0 0.0
        %415 = vmatprep.subr.mxu0 0.0
        %416 = vmatpush2.xpose.msra.mxu0 0.0
        %417 = vmatprep.subr.mxu0 0.0
        %418 = vmatpush2.xpose.msra.mxu0 0.0
        %419 = vmatprep.subr.mxu0 0.0
        %420 = vmatpush2.xpose.msra.mxu0 0.0
        %421 = vmatprep.subr.mxu0 0.0
        %422 = vmatpush2.xpose.msra.mxu0 0.0
        %423 = vmatprep.subr.mxu0 0.0
        %424 = vmatpush2.xpose.msra.mxu0 0.0
        %425 = vmatprep.subr.mxu0 0.0
        %426 = vmatpush2.xpose.msra.mxu0 0.0
        %427 = vmatprep.mubr.f32.mxu0 0.0
        %428 = vmatmul.mubr.f32.gmra.mxu0 %v358
        %v429 = vpop.f32.mrf.mxu0
        %v430 = vadd.f32 0.0, %v429
        %v431 = vpop.f32.mrf.mxu0
        %432 = vdwg.mxu0
        %v434 = vlaneseq
        %v435 = vshrl.u32 %v434, 7
        %v436 = vsub.s32 0, %v435
        %v437 = vrot.slane %v354, %v436
        %v439 = vsub.f32 %v430, %v437
        %v440 = vsel %vm356, %v439, -inf
        %441 = vmax.xlane.f32.xlu0 %v440
        %v442 = vpop.xlane.xlu0 %441
        %v443 = vsub.f32 %v439, %v442
        %v444 = vmul.f32 %v443, 1.442695
        %v445 = vpow.pop %v444
        %v446 = vsel %vm356, %v445, 0.0
        %447 = vadd.xlane.f32.xlu0 %v446
        %v448 = vpop.xlane.xlu0 %447
        %v450 = vsel %vm356, %v445, 0
        %452 = vmatprep.subr.mxu0 0.0
        %453 = vmatpush1.msra.mxu0 0.0
        %454 = vmatprep.subr.mxu0 0.0
        %455 = vmatpush1.msra.mxu0 0.0
        %456 = vmatprep.subr.mxu0 0.0
        %457 = vmatpush1.msra.mxu0 0.0
        %458 = vmatprep.subr.mxu0 0.0
        %459 = vmatpush1.msra.mxu0 0.0
        %460 = vmatprep.subr.mxu0 0.0
        %461 = vmatpush1.msra.mxu0 0.0
        %462 = vmatprep.subr.mxu0 0.0
        %463 = vmatpush1.msra.mxu0 0.0
        %464 = vmatprep.subr.mxu0 0.0
        %465 = vmatpush1.msra.mxu0 0.0
        %466 = vmatprep.subr.mxu0 0.0
        %467 = vmatpush1.msra.mxu0 0.0
        %468 = vmatprep.subr.mxu0 0.0
        %469 = vmatpush1.msra.mxu0 0.0
        %470 = vmatprep.subr.mxu0 0.0
        %471 = vmatpush1.msra.mxu0 0.0
        %472 = vmatprep.subr.mxu0 0.0
        %473 = vmatpush1.msra.mxu0 0.0
        %474 = vmatprep.subr.mxu0 0.0
        %475 = vmatpush1.msra.mxu0 0.0
        %476 = vmatprep.subr.mxu0 0.0
        %477 = vmatpush1.msra.mxu0 0.0
        %478 = vmatprep.subr.mxu0 0.0
        %479 = vmatpush1.msra.mxu0 0.0
        %480 = vmatprep.subr.mxu0 0.0
        %481 = vmatpush1.msra.mxu0 0.0
        %482 = vmatprep.subr.mxu0 0.0
        %483 = vmatpush1.msra.mxu0 %v353
        %484 = vmatprep.subr.mxu0 0.0
        %485 = vmatpush2.msra.mxu0 0.0
        %486 = vmatprep.subr.mxu0 0.0
        %487 = vmatpush2.msra.mxu0 0.0
        %488 = vmatprep.subr.mxu0 0.0
        %489 = vmatpush2.msra.mxu0 0.0
        %490 = vmatprep.subr.mxu0 0.0
        %491 = vmatpush2.msra.mxu0 0.0
        %492 = vmatprep.subr.mxu0 0.0
        %493 = vmatpush2.msra.mxu0 0.0
        %494 = vmatprep.subr.mxu0 0.0
        %495 = vmatpush2.msra.mxu0 0.0
        %496 = vmatprep.subr.mxu0 0.0
        %497 = vmatpush2.msra.mxu0 0.0
        %498 = vmatprep.subr.mxu0 0.0
        %499 = vmatpush2.msra.mxu0 0.0
        %500 = vmatprep.subr.mxu0 0.0
        %501 = vmatpush2.msra.mxu0 0.0
        %502 = vmatprep.subr.mxu0 0.0
        %503 = vmatpush2.msra.mxu0 0.0
        %504 = vmatprep.subr.mxu0 0.0
        %505 = vmatpush2.msra.mxu0 0.0
        %506 = vmatprep.subr.mxu0 0.0
        %507 = vmatpush2.msra.mxu0 0.0
        %508 = vmatprep.subr.mxu0 0.0
        %509 = vmatpush2.msra.mxu0 0.0
        %510 = vmatprep.subr.mxu0 0.0
        %511 = vmatpush2.msra.mxu0 0.0
        %512 = vmatprep.subr.mxu0 0.0
        %513 = vmatpush2.msra.mxu0 0.0
        %514 = vmatprep.subr.mxu0 0.0
        %515 = vmatpush2.msra.mxu0 0.0
        %516 = vmatprep.mubr.f32.mxu0 0.0
        %517 = vmatmul.mubr.f32.gmra.mxu0 %v450
        %v518 = vpop.f32.mrf.mxu0
        %v519 = vadd.f32 0.0, %v518
        %v520 = vpop.f32.mrf.mxu0
        %521 = vdwg.mxu0
        %v522 = vrcp.pop %v448
        %v523 = vmul.f32 %v519, %v522
        %s524 = scalar_lea.vmem %s293, 8 [#allocation2]
        %v525 = vld [vmem:[%s524] sm:$0xff]
        %s526 = scalar_lea.vmem %s302, 8 [#allocation5]
        %v527 = vld [vmem:[%s526] sm:$0xff]
        %s528 = scalar_lea.vmem %s311, 1 [#allocation7]
        %v529 = vld [vmem:[%s528] sm:$0x1]
        %v530 = vmul.f32 %v525, 2.0
        %v532 = vsel %vm356, %v530, 0
        %v535 = vsel %vm356, %v527, 0
        %537 = vmatprep.subr.mxu0 0.0
        %538 = vmatpush1.xpose.msra.mxu0 0.0
        %539 = vmatprep.subr.mxu0 0.0
        %540 = vmatpush1.xpose.msra.mxu0 0.0
        %541 = vmatprep.subr.mxu0 0.0
        %542 = vmatpush1.xpose.msra.mxu0 0.0
        %543 = vmatprep.subr.mxu0 0.0
        %544 = vmatpush1.xpose.msra.mxu0 0.0
        %545 = vmatprep.subr.mxu0 0.0
        %546 = vmatpush1.xpose.msra.mxu0 0.0
        %547 = vmatprep.subr.mxu0 0.0
        %548 = vmatpush1.xpose.msra.mxu0 0.0
        %549 = vmatprep.subr.mxu0 0.0
        %550 = vmatpush1.xpose.msra.mxu0 0.0
        %551 = vmatprep.subr.mxu0 0.0
        %552 = vmatpush1.xpose.msra.mxu0 0.0
        %553 = vmatprep.subr.mxu0 0.0
        %554 = vmatpush1.xpose.msra.mxu0 0.0
        %555 = vmatprep.subr.mxu0 0.0
        %556 = vmatpush1.xpose.msra.mxu0 0.0
        %557 = vmatprep.subr.mxu0 0.0
        %558 = vmatpush1.xpose.msra.mxu0 0.0
        %559 = vmatprep.subr.mxu0 0.0
        %560 = vmatpush1.xpose.msra.mxu0 0.0
        %561 = vmatprep.subr.mxu0 0.0
        %562 = vmatpush1.xpose.msra.mxu0 0.0
        %563 = vmatprep.subr.mxu0 0.0
        %564 = vmatpush1.xpose.msra.mxu0 0.0
        %565 = vmatprep.subr.mxu0 0.0
        %566 = vmatpush1.xpose.msra.mxu0 0.0
        %567 = vmatprep.subr.mxu0 0.0
        %568 = vmatpush1.xpose.msra.mxu0 %v535
        %569 = vmatprep.subr.mxu0 0.0
        %570 = vmatpush2.xpose.msra.mxu0 0.0
        %571 = vmatprep.subr.mxu0 0.0
        %572 = vmatpush2.xpose.msra.mxu0 0.0
        %573 = vmatprep.subr.mxu0 0.0
        %574 = vmatpush2.xpose.msra.mxu0 0.0
        %575 = vmatprep.subr.mxu0 0.0
        %576 = vmatpush2.xpose.msra.mxu0 0.0
        %577 = vmatprep.subr.mxu0 0.0
        %578 = vmatpush2.xpose.msra.mxu0 0.0
        %579 = vmatprep.subr.mxu0 0.0
        %580 = vmatpush2.xpose.msra.mxu0 0.0
        %581 = vmatprep.subr.mxu0 0.0
        %582 = vmatpush2.xpose.msra.mxu0 0.0
        %583 = vmatprep.subr.mxu0 0.0
        %584 = vmatpush2.xpose.msra.mxu0 0.0
        %585 = vmatprep.subr.mxu0 0.0
        %586 = vmatpush2.xpose.msra.mxu0 0.0
        %587 = vmatprep.subr.mxu0 0.0
        %588 = vmatpush2.xpose.msra.mxu0 0.0
        %589 = vmatprep.subr.mxu0 0.0
        %590 = vmatpush2.xpose.msra.mxu0 0.0
        %591 = vmatprep.subr.mxu0 0.0
        %592 = vmatpush2.xpose.msra.mxu0 0.0
        %593 = vmatprep.subr.mxu0 0.0
        %594 = vmatpush2.xpose.msra.mxu0 0.0
        %595 = vmatprep.subr.mxu0 0.0
        %596 = vmatpush2.xpose.msra.mxu0 0.0
        %597 = vmatprep.subr.mxu0 0.0
        %598 = vmatpush2.xpose.msra.mxu0 0.0
        %599 = vmatprep.subr.mxu0 0.0
        %600 = vmatpush2.xpose.msra.mxu0 0.0
        %601 = vmatprep.mubr.f32.mxu0 0.0
        %602 = vmatmul.mubr.f32.gmra.mxu0 %v532
        %v603 = vpop.f32.mrf.mxu0
        %v604 = vadd.f32 0.0, %v603
        %v605 = vpop.f32.mrf.mxu0
        %606 = vdwg.mxu0
        %v608 = vlaneseq
        %v609 = vshrl.u32 %v608, 7
        %v610 = vsub.s32 0, %v609
        %v611 = vrot.slane %v529, %v610
        %v613 = vsub.f32 %v604, %v611
        %v614 = vsel %vm356, %v613, -inf
        %615 = vmax.xlane.f32.xlu0 %v614
        %v616 = vpop.xlane.xlu0 %615
        %v617 = vsub.f32 %v613, %v616
        %v618 = vmul.f32 %v617, 1.442695
        %v619 = vpow.pop %v618
        %v620 = vsel %vm356, %v619, 0.0
        %621 = vadd.xlane.f32.xlu0 %v620
        %v622 = vpop.xlane.xlu0 %621
        %v624 = vsel %vm356, %v619, 0
        %626 = vmatprep.subr.mxu0 0.0
        %627 = vmatpush1.msra.mxu0 0.0
        %628 = vmatprep.subr.mxu0 0.0
        %629 = vmatpush1.msra.mxu0 0.0
        %630 = vmatprep.subr.mxu0 0.0
        %631 = vmatpush1.msra.mxu0 0.0
        %632 = vmatprep.subr.mxu0 0.0
        %633 = vmatpush1.msra.mxu0 0.0
        %634 = vmatprep.subr.mxu0 0.0
        %635 = vmatpush1.msra.mxu0 0.0
        %636 = vmatprep.subr.mxu0 0.0
        %637 = vmatpush1.msra.mxu0 0.0
        %638 = vmatprep.subr.mxu0 0.0
        %639 = vmatpush1.msra.mxu0 0.0
        %640 = vmatprep.subr.mxu0 0.0
        %641 = vmatpush1.msra.mxu0 0.0
        %642 = vmatprep.subr.mxu0 0.0
        %643 = vmatpush1.msra.mxu0 0.0
        %644 = vmatprep.subr.mxu0 0.0
        %645 = vmatpush1.msra.mxu0 0.0
        %646 = vmatprep.subr.mxu0 0.0
        %647 = vmatpush1.msra.mxu0 0.0
        %648 = vmatprep.subr.mxu0 0.0
        %649 = vmatpush1.msra.mxu0 0.0
        %650 = vmatprep.subr.mxu0 0.0
        %651 = vmatpush1.msra.mxu0 0.0
        %652 = vmatprep.subr.mxu0 0.0
        %653 = vmatpush1.msra.mxu0 0.0
        %654 = vmatprep.subr.mxu0 0.0
        %655 = vmatpush1.msra.mxu0 0.0
        %656 = vmatprep.subr.mxu0 0.0
        %657 = vmatpush1.msra.mxu0 %v527
        %658 = vmatprep.subr.mxu0 0.0
        %659 = vmatpush2.msra.mxu0 0.0
        %660 = vmatprep.subr.mxu0 0.0
        %661 = vmatpush2.msra.mxu0 0.0
        %662 = vmatprep.subr.mxu0 0.0
        %663 = vmatpush2.msra.mxu0 0.0
        %664 = vmatprep.subr.mxu0 0.0
        %665 = vmatpush2.msra.mxu0 0.0
        %666 = vmatprep.subr.mxu0 0.0
        %667 = vmatpush2.msra.mxu0 0.0
        %668 = vmatprep.subr.mxu0 0.0
        %669 = vmatpush2.msra.mxu0 0.0
        %670 = vmatprep.subr.mxu0 0.0
        %671 = vmatpush2.msra.mxu0 0.0
        %672 = vmatprep.subr.mxu0 0.0
        %673 = vmatpush2.msra.mxu0 0.0
        %674 = vmatprep.subr.mxu0 0.0
        %675 = vmatpush2.msra.mxu0 0.0
        %676 = vmatprep.subr.mxu0 0.0
        %677 = vmatpush2.msra.mxu0 0.0
        %678 = vmatprep.subr.mxu0 0.0
        %679 = vmatpush2.msra.mxu0 0.0
        %680 = vmatprep.subr.mxu0 0.0
        %681 = vmatpush2.msra.mxu0 0.0
        %682 = vmatprep.subr.mxu0 0.0
        %683 = vmatpush2.msra.mxu0 0.0
        %684 = vmatprep.subr.mxu0 0.0
        %685 = vmatpush2.msra.mxu0 0.0
        %686 = vmatprep.subr.mxu0 0.0
        %687 = vmatpush2.msra.mxu0 0.0
        %688 = vmatprep.subr.mxu0 0.0
        %689 = vmatpush2.msra.mxu0 0.0
        %690 = vmatprep.mubr.f32.mxu0 0.0
        %691 = vmatmul.mubr.f32.gmra.mxu0 %v624
        %v692 = vpop.f32.mrf.mxu0
        %v693 = vadd.f32 0.0, %v692
        %v694 = vpop.f32.mrf.mxu0
        %695 = vdwg.mxu0
        %v696 = vrcp.pop %v622
        %v697 = vmul.f32 %v693, %v696
        %s698 = scalar_lea.vmem %s293, 16 [#allocation2]
        %v699 = vld [vmem:[%s698] sm:$0xff]
        %s700 = scalar_lea.vmem %s302, 16 [#allocation5]
        %v701 = vld [vmem:[%s700] sm:$0xff]
        %s702 = scalar_lea.vmem %s311, 2 [#allocation7]
        %v703 = vld [vmem:[%s702] sm:$0x1]
        %v704 = vmul.f32 %v699, 2.0
        %v706 = vsel %vm356, %v704, 0
        %v709 = vsel %vm356, %v701, 0
        %711 = vmatprep.subr.mxu0 0.0
        %712 = vmatpush1.xpose.msra.mxu0 0.0
        %713 = vmatprep.subr.mxu0 0.0
        %714 = vmatpush1.xpose.msra.mxu0 0.0
        %715 = vmatprep.subr.mxu0 0.0
        %716 = vmatpush1.xpose.msra.mxu0 0.0
        %717 = vmatprep.subr.mxu0 0.0
        %718 = vmatpush1.xpose.msra.mxu0 0.0
        %719 = vmatprep.subr.mxu0 0.0
        %720 = vmatpush1.xpose.msra.mxu0 0.0
        %721 = vmatprep.subr.mxu0 0.0
        %722 = vmatpush1.xpose.msra.mxu0 0.0
        %723 = vmatprep.subr.mxu0 0.0
        %724 = vmatpush1.xpose.msra.mxu0 0.0
        %725 = vmatprep.subr.mxu0 0.0
        %726 = vmatpush1.xpose.msra.mxu0 0.0
        %727 = vmatprep.subr.mxu0 0.0
        %728 = vmatpush1.xpose.msra.mxu0 0.0
        %729 = vmatprep.subr.mxu0 0.0
        %730 = vmatpush1.xpose.msra.mxu0 0.0
        %731 = vmatprep.subr.mxu0 0.0
        %732 = vmatpush1.xpose.msra.mxu0 0.0
        %733 = vmatprep.subr.mxu0 0.0
        %734 = vmatpush1.xpose.msra.mxu0 0.0
        %735 = vmatprep.subr.mxu0 0.0
        %736 = vmatpush1.xpose.msra.mxu0 0.0
        %737 = vmatprep.subr.mxu0 0.0
        %738 = vmatpush1.xpose.msra.mxu0 0.0
        %739 = vmatprep.subr.mxu0 0.0
        %740 = vmatpush1.xpose.msra.mxu0 0.0
        %741 = vmatprep.subr.mxu0 0.0
        %742 = vmatpush1.xpose.msra.mxu0 %v709
        %743 = vmatprep.subr.mxu0 0.0
        %744 = vmatpush2.xpose.msra.mxu0 0.0
        %745 = vmatprep.subr.mxu0 0.0
        %746 = vmatpush2.xpose.msra.mxu0 0.0
        %747 = vmatprep.subr.mxu0 0.0
        %748 = vmatpush2.xpose.msra.mxu0 0.0
        %749 = vmatprep.subr.mxu0 0.0
        %750 = vmatpush2.xpose.msra.mxu0 0.0
        %751 = vmatprep.subr.mxu0 0.0
        %752 = vmatpush2.xpose.msra.mxu0 0.0
        %753 = vmatprep.subr.mxu0 0.0
        %754 = vmatpush2.xpose.msra.mxu0 0.0
        %755 = vmatprep.subr.mxu0 0.0
        %756 = vmatpush2.xpose.msra.mxu0 0.0
        %757 = vmatprep.subr.mxu0 0.0
        %758 = vmatpush2.xpose.msra.mxu0 0.0
        %759 = vmatprep.subr.mxu0 0.0
        %760 = vmatpush2.xpose.msra.mxu0 0.0
        %761 = vmatprep.subr.mxu0 0.0
        %762 = vmatpush2.xpose.msra.mxu0 0.0
        %763 = vmatprep.subr.mxu0 0.0
        %764 = vmatpush2.xpose.msra.mxu0 0.0
        %765 = vmatprep.subr.mxu0 0.0
        %766 = vmatpush2.xpose.msra.mxu0 0.0
        %767 = vmatprep.subr.mxu0 0.0
        %768 = vmatpush2.xpose.msra.mxu0 0.0
        %769 = vmatprep.subr.mxu0 0.0
        %770 = vmatpush2.xpose.msra.mxu0 0.0
        %771 = vmatprep.subr.mxu0 0.0
        %772 = vmatpush2.xpose.msra.mxu0 0.0
        %773 = vmatprep.subr.mxu0 0.0
        %774 = vmatpush2.xpose.msra.mxu0 0.0
        %775 = vmatprep.mubr.f32.mxu0 0.0
        %776 = vmatmul.mubr.f32.gmra.mxu0 %v706
        %v777 = vpop.f32.mrf.mxu0
        %v778 = vadd.f32 0.0, %v777
        %v779 = vpop.f32.mrf.mxu0
        %780 = vdwg.mxu0
        %v782 = vlaneseq
        %v783 = vshrl.u32 %v782, 7
        %v784 = vsub.s32 0, %v783
        %v785 = vrot.slane %v703, %v784
        %v787 = vsub.f32 %v778, %v785
        %v788 = vsel %vm356, %v787, -inf
        %789 = vmax.xlane.f32.xlu0 %v788
        %v790 = vpop.xlane.xlu0 %789
        %v791 = vsub.f32 %v787, %v790
        %v792 = vmul.f32 %v791, 1.442695
        %v793 = vpow.pop %v792
        %v794 = vsel %vm356, %v793, 0.0
        %795 = vadd.xlane.f32.xlu0 %v794
        %v796 = vpop.xlane.xlu0 %795
        %v798 = vsel %vm356, %v793, 0
        %800 = vmatprep.subr.mxu0 0.0
        %801 = vmatpush1.msra.mxu0 0.0
        %802 = vmatprep.subr.mxu0 0.0
        %803 = vmatpush1.msra.mxu0 0.0
        %804 = vmatprep.subr.mxu0 0.0
        %805 = vmatpush1.msra.mxu0 0.0
        %806 = vmatprep.subr.mxu0 0.0
        %807 = vmatpush1.msra.mxu0 0.0
        %808 = vmatprep.subr.mxu0 0.0
        %809 = vmatpush1.msra.mxu0 0.0
        %810 = vmatprep.subr.mxu0 0.0
        %811 = vmatpush1.msra.mxu0 0.0
        %812 = vmatprep.subr.mxu0 0.0
        %813 = vmatpush1.msra.mxu0 0.0
        %814 = vmatprep.subr.mxu0 0.0
        %815 = vmatpush1.msra.mxu0 0.0
        %816 = vmatprep.subr.mxu0 0.0
        %817 = vmatpush1.msra.mxu0 0.0
        %818 = vmatprep.subr.mxu0 0.0
        %819 = vmatpush1.msra.mxu0 0.0
        %820 = vmatprep.subr.mxu0 0.0
        %821 = vmatpush1.msra.mxu0 0.0
        %822 = vmatprep.subr.mxu0 0.0
        %823 = vmatpush1.msra.mxu0 0.0
        %824 = vmatprep.subr.mxu0 0.0
        %825 = vmatpush1.msra.mxu0 0.0
        %826 = vmatprep.subr.mxu0 0.0
        %827 = vmatpush1.msra.mxu0 0.0
        %828 = vmatprep.subr.mxu0 0.0
        %829 = vmatpush1.msra.mxu0 0.0
        %830 = vmatprep.subr.mxu0 0.0
        %831 = vmatpush1.msra.mxu0 %v701
        %832 = vmatprep.subr.mxu0 0.0
        %833 = vmatpush2.msra.mxu0 0.0
        %834 = vmatprep.subr.mxu0 0.0
        %835 = vmatpush2.msra.mxu0 0.0
        %836 = vmatprep.subr.mxu0 0.0
        %837 = vmatpush2.msra.mxu0 0.0
        %838 = vmatprep.subr.mxu0 0.0
        %839 = vmatpush2.msra.mxu0 0.0
        %840 = vmatprep.subr.mxu0 0.0
        %841 = vmatpush2.msra.mxu0 0.0
        %842 = vmatprep.subr.mxu0 0.0
        %843 = vmatpush2.msra.mxu0 0.0
        %844 = vmatprep.subr.mxu0 0.0
        %845 = vmatpush2.msra.mxu0 0.0
        %846 = vmatprep.subr.mxu0 0.0
        %847 = vmatpush2.msra.mxu0 0.0
        %848 = vmatprep.subr.mxu0 0.0
        %849 = vmatpush2.msra.mxu0 0.0
        %850 = vmatprep.subr.mxu0 0.0
        %851 = vmatpush2.msra.mxu0 0.0
        %852 = vmatprep.subr.mxu0 0.0
        %853 = vmatpush2.msra.mxu0 0.0
        %854 = vmatprep.subr.mxu0 0.0
        %855 = vmatpush2.msra.mxu0 0.0
        %856 = vmatprep.subr.mxu0 0.0
        %857 = vmatpush2.msra.mxu0 0.0
        %858 = vmatprep.subr.mxu0 0.0
        %859 = vmatpush2.msra.mxu0 0.0
        %860 = vmatprep.subr.mxu0 0.0
        %861 = vmatpush2.msra.mxu0 0.0
        %862 = vmatprep.subr.mxu0 0.0
        %863 = vmatpush2.msra.mxu0 0.0
        %864 = vmatprep.mubr.f32.mxu0 0.0
        %865 = vmatmul.mubr.f32.gmra.mxu0 %v798
        %v866 = vpop.f32.mrf.mxu0
        %v867 = vadd.f32 0.0, %v866
        %v868 = vpop.f32.mrf.mxu0
        %869 = vdwg.mxu0
        %v870 = vrcp.pop %v796
        %v871 = vmul.f32 %v867, %v870
        %s872 = scalar_lea.vmem %s293, 24 [#allocation2]
        %v873 = vld [vmem:[%s872] sm:$0xff]
        %s874 = scalar_lea.vmem %s302, 24 [#allocation5]
        %v875 = vld [vmem:[%s874] sm:$0xff]
        %s876 = scalar_lea.vmem %s311, 3 [#allocation7]
        %v877 = vld [vmem:[%s876] sm:$0x1]
        %v878 = vmul.f32 %v873, 2.0
        %v880 = vsel %vm356, %v878, 0
        %v883 = vsel %vm356, %v875, 0
        %885 = vmatprep.subr.mxu0 0.0
        %886 = vmatpush1.xpose.msra.mxu0 0.0
        %887 = vmatprep.subr.mxu0 0.0
        %888 = vmatpush1.xpose.msra.mxu0 0.0
        %889 = vmatprep.subr.mxu0 0.0
        %890 = vmatpush1.xpose.msra.mxu0 0.0
        %891 = vmatprep.subr.mxu0 0.0
        %892 = vmatpush1.xpose.msra.mxu0 0.0
        %893 = vmatprep.subr.mxu0 0.0
        %894 = vmatpush1.xpose.msra.mxu0 0.0
        %895 = vmatprep.subr.mxu0 0.0
        %896 = vmatpush1.xpose.msra.mxu0 0.0
        %897 = vmatprep.subr.mxu0 0.0
        %898 = vmatpush1.xpose.msra.mxu0 0.0
        %899 = vmatprep.subr.mxu0 0.0
        %900 = vmatpush1.xpose.msra.mxu0 0.0
        %901 = vmatprep.subr.mxu0 0.0
        %902 = vmatpush1.xpose.msra.mxu0 0.0
        %903 = vmatprep.subr.mxu0 0.0
        %904 = vmatpush1.xpose.msra.mxu0 0.0
        %905 = vmatprep.subr.mxu0 0.0
        %906 = vmatpush1.xpose.msra.mxu0 0.0
        %907 = vmatprep.subr.mxu0 0.0
        %908 = vmatpush1.xpose.msra.mxu0 0.0
        %909 = vmatprep.subr.mxu0 0.0
        %910 = vmatpush1.xpose.msra.mxu0 0.0
        %911 = vmatprep.subr.mxu0 0.0
        %912 = vmatpush1.xpose.msra.mxu0 0.0
        %913 = vmatprep.subr.mxu0 0.0
        %914 = vmatpush1.xpose.msra.mxu0 0.0
        %915 = vmatprep.subr.mxu0 0.0
        %916 = vmatpush1.xpose.msra.mxu0 %v883
        %917 = vmatprep.subr.mxu0 0.0
        %918 = vmatpush2.xpose.msra.mxu0 0.0
        %919 = vmatprep.subr.mxu0 0.0
        %920 = vmatpush2.xpose.msra.mxu0 0.0
        %921 = vmatprep.subr.mxu0 0.0
        %922 = vmatpush2.xpose.msra.mxu0 0.0
        %923 = vmatprep.subr.mxu0 0.0
        %924 = vmatpush2.xpose.msra.mxu0 0.0
        %925 = vmatprep.subr.mxu0 0.0
        %926 = vmatpush2.xpose.msra.mxu0 0.0
        %927 = vmatprep.subr.mxu0 0.0
        %928 = vmatpush2.xpose.msra.mxu0 0.0
        %929 = vmatprep.subr.mxu0 0.0
        %930 = vmatpush2.xpose.msra.mxu0 0.0
        %931 = vmatprep.subr.mxu0 0.0
        %932 = vmatpush2.xpose.msra.mxu0 0.0
        %933 = vmatprep.subr.mxu0 0.0
        %934 = vmatpush2.xpose.msra.mxu0 0.0
        %935 = vmatprep.subr.mxu0 0.0
        %936 = vmatpush2.xpose.msra.mxu0 0.0
        %937 = vmatprep.subr.mxu0 0.0
        %938 = vmatpush2.xpose.msra.mxu0 0.0
        %939 = vmatprep.subr.mxu0 0.0
        %940 = vmatpush2.xpose.msra.mxu0 0.0
        %941 = vmatprep.subr.mxu0 0.0
        %942 = vmatpush2.xpose.msra.mxu0 0.0
        %943 = vmatprep.subr.mxu0 0.0
        %944 = vmatpush2.xpose.msra.mxu0 0.0
        %945 = vmatprep.subr.mxu0 0.0
        %946 = vmatpush2.xpose.msra.mxu0 0.0
        %947 = vmatprep.subr.mxu0 0.0
        %948 = vmatpush2.xpose.msra.mxu0 0.0
        %949 = vmatprep.mubr.f32.mxu0 0.0
        %950 = vmatmul.mubr.f32.gmra.mxu0 %v880
        %v951 = vpop.f32.mrf.mxu0
        %v952 = vadd.f32 0.0, %v951
        %v953 = vpop.f32.mrf.mxu0
        %954 = vdwg.mxu0
        %v956 = vlaneseq
        %v957 = vshrl.u32 %v956, 7
        %v958 = vsub.s32 0, %v957
        %v959 = vrot.slane %v877, %v958
        %v961 = vsub.f32 %v952, %v959
        %v962 = vsel %vm356, %v961, -inf
        %963 = vmax.xlane.f32.xlu0 %v962
        %v964 = vpop.xlane.xlu0 %963
        %v965 = vsub.f32 %v961, %v964
        %v966 = vmul.f32 %v965, 1.442695
        %v967 = vpow.pop %v966
        %v968 = vsel %vm356, %v967, 0.0
        %969 = vadd.xlane.f32.xlu0 %v968
        %v970 = vpop.xlane.xlu0 %969
        %v972 = vsel %vm356, %v967, 0
        %974 = vmatprep.subr.mxu0 0.0
        %975 = vmatpush1.msra.mxu0 0.0
        %976 = vmatprep.subr.mxu0 0.0
        %977 = vmatpush1.msra.mxu0 0.0
        %978 = vmatprep.subr.mxu0 0.0
        %979 = vmatpush1.msra.mxu0 0.0
        %980 = vmatprep.subr.mxu0 0.0
        %981 = vmatpush1.msra.mxu0 0.0
        %982 = vmatprep.subr.mxu0 0.0
        %983 = vmatpush1.msra.mxu0 0.0
        %984 = vmatprep.subr.mxu0 0.0
        %985 = vmatpush1.msra.mxu0 0.0
        %986 = vmatprep.subr.mxu0 0.0
        %987 = vmatpush1.msra.mxu0 0.0
        %988 = vmatprep.subr.mxu0 0.0
        %989 = vmatpush1.msra.mxu0 0.0
        %990 = vmatprep.subr.mxu0 0.0
        %991 = vmatpush1.msra.mxu0 0.0
        %992 = vmatprep.subr.mxu0 0.0
        %993 = vmatpush1.msra.mxu0 0.0
        %994 = vmatprep.subr.mxu0 0.0
        %995 = vmatpush1.msra.mxu0 0.0
        %996 = vmatprep.subr.mxu0 0.0
        %997 = vmatpush1.msra.mxu0 0.0
        %998 = vmatprep.subr.mxu0 0.0
        %999 = vmatpush1.msra.mxu0 0.0
        %1000 = vmatprep.subr.mxu0 0.0
        %1001 = vmatpush1.msra.mxu0 0.0
        %1002 = vmatprep.subr.mxu0 0.0
        %1003 = vmatpush1.msra.mxu0 0.0
        %1004 = vmatprep.subr.mxu0 0.0
        %1005 = vmatpush1.msra.mxu0 %v875
        %1006 = vmatprep.subr.mxu0 0.0
        %1007 = vmatpush2.msra.mxu0 0.0
        %1008 = vmatprep.subr.mxu0 0.0
        %1009 = vmatpush2.msra.mxu0 0.0
        %1010 = vmatprep.subr.mxu0 0.0
        %1011 = vmatpush2.msra.mxu0 0.0
        %1012 = vmatprep.subr.mxu0 0.0
        %1013 = vmatpush2.msra.mxu0 0.0
        %1014 = vmatprep.subr.mxu0 0.0
        %1015 = vmatpush2.msra.mxu0 0.0
        %1016 = vmatprep.subr.mxu0 0.0
        %1017 = vmatpush2.msra.mxu0 0.0
        %1018 = vmatprep.subr.mxu0 0.0
        %1019 = vmatpush2.msra.mxu0 0.0
        %1020 = vmatprep.subr.mxu0 0.0
        %1021 = vmatpush2.msra.mxu0 0.0
        %1022 = vmatprep.subr.mxu0 0.0
        %1023 = vmatpush2.msra.mxu0 0.0
        %1024 = vmatprep.subr.mxu0 0.0
        %1025 = vmatpush2.msra.mxu0 0.0
        %1026 = vmatprep.subr.mxu0 0.0
        %1027 = vmatpush2.msra.mxu0 0.0
        %1028 = vmatprep.subr.mxu0 0.0
        %1029 = vmatpush2.msra.mxu0 0.0
        %1030 = vmatprep.subr.mxu0 0.0
        %1031 = vmatpush2.msra.mxu0 0.0
        %1032 = vmatprep.subr.mxu0 0.0
        %1033 = vmatpush2.msra.mxu0 0.0
        %1034 = vmatprep.subr.mxu0 0.0
        %1035 = vmatpush2.msra.mxu0 0.0
        %1036 = vmatprep.subr.mxu0 0.0
        %1037 = vmatpush2.msra.mxu0 0.0
        %1038 = vmatprep.mubr.f32.mxu0 0.0
        %1039 = vmatmul.mubr.f32.gmra.mxu0 %v972
        %v1040 = vpop.f32.mrf.mxu0
        %v1041 = vadd.f32 0.0, %v1040
        %v1042 = vpop.f32.mrf.mxu0
        %1043 = vdwg.mxu0
        %v1044 = vrcp.pop %v970
        %v1045 = vmul.f32 %v1041, %v1044
        %1047 = vrot.lane.b32.xlu0 %v697, 8
        %v1048 = vpop.permute.xlu0 %1047
        %1051 = vrot.lane.b32.xlu0 %v871, 16
        %v1052 = vpop.permute.xlu0 %1051
        %1055 = vrot.lane.b32.xlu0 %v1045, 24
        %v1056 = vpop.permute.xlu0 %1055
        %v1058 = vsel %vm356, %v523, %v1048
        %vm1059 = vcmask 130048
        %v1060 = vsel %vm1059, %v1058, %v1052
        %vm1061 = vcmask 195584
        %v1062 = vsel %vm1061, %v1060, %v1056
        %v1063 = vld [vmem:[#allocation8] sm:$0xff]
        %v1064 = vld [vmem:[#allocation8 + $0x8] sm:$0xff]
        %v1065 = vld [vmem:[#allocation8 + $0x10] sm:$0xff]
        %v1066 = vld [vmem:[#allocation8 + $0x18] sm:$0xff]
        %v1067 = vld [vmem:[%s4] sm:$0x1]
        %v1069 = vlaneseq
        %v1070 = vshrl.u32 %v1069, 7
        %v1071 = vsub.s32 0, %v1070
        %v1072 = vrot.slane %v1067, %v1071
        %vm1074 = vcmask 261120
        %v1076 = vsel %vm1074, %v1062, 0
        %1078 = vmatprep.subr.mxu0 0.0
        %1079 = vmatpush1.msra.mxu0 0.0
        %1080 = vmatprep.subr.mxu0 0.0
        %1081 = vmatpush1.msra.mxu0 0.0
        %1082 = vmatprep.subr.mxu0 0.0
        %1083 = vmatpush1.msra.mxu0 0.0
        %1084 = vmatprep.subr.mxu0 0.0
        %1085 = vmatpush1.msra.mxu0 0.0
        %1086 = vmatprep.subr.mxu0 0.0
        %1087 = vmatpush1.msra.mxu0 0.0
        %1088 = vmatprep.subr.mxu0 0.0
        %1089 = vmatpush1.msra.mxu0 0.0
        %1090 = vmatprep.subr.mxu0 0.0
        %1091 = vmatpush1.msra.mxu0 0.0
        %1092 = vmatprep.subr.mxu0 0.0
        %1093 = vmatpush1.msra.mxu0 0.0
        %1094 = vmatprep.subr.mxu0 0.0
        %1095 = vmatpush1.msra.mxu0 0.0
        %1096 = vmatprep.subr.mxu0 0.0
        %1097 = vmatpush1.msra.mxu0 0.0
        %1098 = vmatprep.subr.mxu0 0.0
        %1099 = vmatpush1.msra.mxu0 0.0
        %1100 = vmatprep.subr.mxu0 0.0
        %1101 = vmatpush1.msra.mxu0 0.0
        %1102 = vmatprep.subr.mxu0 0.0
        %1103 = vmatpush1.msra.mxu0 %v1066
        %1104 = vmatprep.subr.mxu0 0.0
        %1105 = vmatpush1.msra.mxu0 %v1065
        %1106 = vmatprep.subr.mxu0 0.0
        %1107 = vmatpush1.msra.mxu0 %v1064
        %1108 = vmatprep.subr.mxu0 0.0
        %1109 = vmatpush1.msra.mxu0 %v1063
        %1110 = vmatprep.subr.mxu0 0.0
        %1111 = vmatpush2.msra.mxu0 0.0
        %1112 = vmatprep.subr.mxu0 0.0
        %1113 = vmatpush2.msra.mxu0 0.0
        %1114 = vmatprep.subr.mxu0 0.0
        %1115 = vmatpush2.msra.mxu0 0.0
        %1116 = vmatprep.subr.mxu0 0.0
        %1117 = vmatpush2.msra.mxu0 0.0
        %1118 = vmatprep.subr.mxu0 0.0
        %1119 = vmatpush2.msra.mxu0 0.0
        %1120 = vmatprep.subr.mxu0 0.0
        %1121 = vmatpush2.msra.mxu0 0.0
        %1122 = vmatprep.subr.mxu0 0.0
        %1123 = vmatpush2.msra.mxu0 0.0
        %1124 = vmatprep.subr.mxu0 0.0
        %1125 = vmatpush2.msra.mxu0 0.0
        %1126 = vmatprep.subr.mxu0 0.0
        %1127 = vmatpush2.msra.mxu0 0.0
        %1128 = vmatprep.subr.mxu0 0.0
        %1129 = vmatpush2.msra.mxu0 0.0
        %1130 = vmatprep.subr.mxu0 0.0
        %1131 = vmatpush2.msra.mxu0 0.0
        %1132 = vmatprep.subr.mxu0 0.0
        %1133 = vmatpush2.msra.mxu0 0.0
        %1134 = vmatprep.subr.mxu0 0.0
        %1135 = vmatpush2.msra.mxu0 0.0
        %1136 = vmatprep.subr.mxu0 0.0
        %1137 = vmatpush2.msra.mxu0 0.0
        %1138 = vmatprep.subr.mxu0 0.0
        %1139 = vmatpush2.msra.mxu0 0.0
        %1140 = vmatprep.subr.mxu0 0.0
        %1141 = vmatpush2.msra.mxu0 0.0
        %1142 = vmatprep.mubr.f32.mxu0 0.0
        %1143 = vmatmul.mubr.f32.gmra.mxu0 %v1076
        %v1144 = vpop.f32.mrf.mxu0
        %v1145 = vadd.f32 %v1072, %v1144
        %v1146 = vpop.f32.mrf.mxu0
        %1147 = vdwg.mxu0
        %1148 = vst.msk [vmem:[%s351] sm:$0xff] %vm1074, %v1145
        %s1149 = sand.u32 %s170, 1
        %s1150 = scalar_lea.sflag [#allocation4], %s1149
        %s1151 = sand.u32 %s170, 1
        %s1152 = smul.addr %s1151, 8
        %s1153 = scalar_lea.vmem [#allocation10], %s1152
        // Predicated region
        $region57: #{tpu_custom_call.1} parent=39 // pred_check
          %p1154 = pneg %p180
        $region58: #{tpu_custom_call.1} parent=39 // pred_check_branch
          %1156 = sbr.rel (%p1154) target = $region60
        $region59: #{tpu_custom_call.1} parent=39 // pred_region
          %s1158 = ssub.s32 128, 128
          %1159 = vsyncadd %s1150, %s1158
          %s1160 = sadd.s32 %s31, %s30
          %s1161 = smul.addr %s1160, 128
          %s1162 = scalar_lea.hbm %s5, %s1161
          %s1164 = sshll.u32 %s1153, 4
          %s1165 = int_to_ptr.vmem [resolvable:$true] %s1164
          %1167 = dma.vmem_to_hbm [thread:$0]  %s1165, 128, %s1162, %s1150
        $region60: #{tpu_custom_call.1} parent=39 // pred_fallthru
          _
      $region40: #{tpu_custom_call.1} parent=5 // pred_fallthru
        _
      %p1168 = scmp.le.s32.totalorder 2, %s21
      // Predicated region
      $region61: #{tpu_custom_call.1} parent=5 // pred_check
        %p1169 = pneg %p1168
      $region62: #{tpu_custom_call.1} parent=5 // pred_check_branch
        %1171 = sbr.rel (%p1169) target = $region64
      $region63: #{tpu_custom_call.1} parent=5 // pred_region
        %s1172 = ssub.s32 %s21, 2
        // Predicated region
        $region65: #{tpu_custom_call.1} parent=63 // pred_check
          %p1173 = pneg %p186
        $region66: #{tpu_custom_call.1} parent=63 // pred_check_branch
          %1175 = sbr.rel (%p1173) target = $region68
        $region67: #{tpu_custom_call.1} parent=63 // pred_region
          %s1176 = sand.u32 %s171, 1
          %s1177 = scalar_lea.sflag [#allocation4], %s1176
          %s1178 = sand.u32 %s171, 1
          %s1179 = smul.addr %s1178, 8
          %s1180 = scalar_lea.vmem [#allocation10], %s1179
          %1181 = dma.done %s1177, 128
        $region68: #{tpu_custom_call.1} parent=63 // pred_fallthru
          _
      $region64: #{tpu_custom_call.1} parent=5 // pred_fallthru
        _
    $region6: #{tpu_custom_call.1} parent=1 // loop_footer
      %s25 = sadd.s32 1, %s21
    $region7: #{tpu_custom_call.1} parent=1 // loop_footer_branch
      %20 = sbr.rel target = $region3
    $region8: #{tpu_custom_call.1} parent=1 // loop_exit
      _
    %1182 = vsyncpa [#allocation3], 1
    %s1183 = scalar_lea.sflag [#allocation3], 1
    %1184 = vsyncpa %s1183, 1
    %1185 = vsyncpa [#allocation6], 1
    %s1186 = scalar_lea.sflag [#allocation6], 1
    %1187 = vsyncpa %s1186, 1
    %1188 = vsyncpa [#allocation9], 1
    %1189 = vsyncpa [#allocation4], 1
    %s1190 = scalar_lea.sflag [#allocation4], 1
    %1191 = vsyncpa %s1190, 1

</llo_original>
